<compile_context>
chip_gen: v7x
topology: tpu7x:2x2x1
jax: 0.10.0
libtpu: 0.0.40
codegen_flags: <defaults>
</compile_context>

<pallas_src>
import functools

import jax
import jax.numpy as jnp
from jax.experimental import pallas as pl
from jax.experimental.pallas import tpu as pltpu


def _round_up(x, m):
    return ((x + m - 1) // m) * m


# ----------------------------------------------------------------------------- kernels

def _make_encoder_kernel(num_layers):
    def kernel(x_ref, w_ref, b_ref, o_ref):
        # x_ref: (TM, Dp)  w_ref: (L, Dp, Dp) bf16  b_ref: (L, 1, Dp) f32  o_ref: (TM, Dp)
        act = x_ref[...].astype(jnp.float32)
        for l in range(num_layers):             # small static trip count -> fully unrolled
            y = jnp.dot(act.astype(jnp.bfloat16), w_ref[l],
                        preferred_element_type=jnp.float32)   # bf16 MXU, f32 accumulate
            act = y + b_ref[l]                   # f32 bias add, activation stays in vregs
        o_ref[...] = act.astype(o_ref.dtype)
    return kernel


def _single_layer_kernel(x_ref, w_ref, b_ref, o_ref):
    # Fallback kernel: one layer, one (rows x out-features) tile.
    y = jnp.dot(x_ref[...].astype(jnp.bfloat16), w_ref[...],
                preferred_element_type=jnp.float32)
    o_ref[...] = (y + b_ref[...]).astype(o_ref.dtype)


# ----------------------------------------------------------------------------- sizing

def _vmem_budget():
    """Generation-aware (budget_bytes, vmem_limit_bytes)."""
    cap = None
    try:
        info = pltpu.get_tpu_info()
        for attr in ("vmem_capacity_bytes", "vmem_size_bytes", "vmem_bytes"):
            cap = getattr(info, attr, None)
            if cap:
                break
    except Exception:
        cap = None
    if not cap:
        cap = 64 * 1024 * 1024          # conservative: v7x per-TensorCore VMEM
    cap = int(cap)
    # Scoped limit: ~75% of physical, capped at 100 MiB; leave headroom for Pallas internals.
    limit = min((cap * 3) // 4, 100 * 1024 * 1024)
    budget = limit - 8 * 1024 * 1024    # working-set budget for tiles + resident weights
    return budget, limit


def _choose_row_tile(n, dp, num_layers, budget_bytes):
    """Largest row tile (multiple of 8, <= 2048) whose working set fits the VMEM budget,
    forced down so the grid has >= 2 steps whenever the row count allows it."""
    n8 = _round_up(max(n, 1), 8)
    # Resident (single-buffered, grid-invariant): bf16 weight stack + f32 biases.
    fixed = num_layers * dp * dp * 2 + num_layers * dp * 4
    # Per row: x tile + out tile (double-buffered, f32) + carried-activation headroom.
    per_row = (2 + 2 + 1) * dp * 4
    avail = max(budget_bytes - fixed, per_row * 8)
    tm = (avail // per_row) // 8 * 8
    tm = int(max(8, min(2048, tm, n8)))
    # Guarantee >= 2 grid steps when possible: keeps both v7x TensorCores busy and lets the
    # DMA of tile i+1 overlap compute on tile i.
    if n > 8 and pl.cdiv(n, tm) < 2:
        tm = max(8, _round_up(pl.cdiv(n, 2), 8))
    return tm


# ----------------------------------------------------------------------------- pallas calls

@functools.partial(
    jax.jit, static_argnames=("num_layers", "tm", "vmem_limit", "single_buffer_weights"))
def _fused_encoder_call(x_p, w_stack, b_stack, num_layers, tm, vmem_limit,
                        single_buffer_weights=True):
    n_rows, dp = x_p.shape
    grid = (pl.cdiv(n_rows, tm),)
    const_kwargs = {"pipeline_mode": pl.Buffered(1)} if single_buffer_weights else {}
    flops = 2 * n_rows * dp * dp * num_layers
    bytes_accessed = (x_p.size * x_p.dtype.itemsize
                      + w_stack.size * w_stack.dtype.itemsize
                      + b_stack.size * b_stack.dtype.itemsize
                      + n_rows * dp * x_p.dtype.itemsize)
    return pl.pallas_call(
        _make_encoder_kernel(num_layers),
        out_shape=jax.ShapeDtypeStruct((n_rows, dp), x_p.dtype),
        grid=grid,
        in_specs=[
            pl.BlockSpec((tm, dp), lambda i: (i, 0)),                        # row tile of x
            pl.BlockSpec((num_layers, dp, dp), lambda i: (0, 0, 0), **const_kwargs),  # weights
            pl.BlockSpec((num_layers, 1, dp), lambda i: (0, 0, 0), **const_kwargs),   # biases
        ],
        out_specs=pl.BlockSpec((tm, dp), lambda i: (i, 0)),
        compiler_params=pltpu.CompilerParams(
            dimension_semantics=("parallel",),
            vmem_limit_bytes=vmem_limit),
        cost_estimate=pl.CostEstimate(
            flops=flops, transcendentals=0, bytes_accessed=bytes_accessed),
    )(x_p, w_stack, b_stack)


@functools.partial(jax.jit, static_argnames=("tm", "tn", "vmem_limit"))
def _single_layer_call(x_p, w, b, tm, tn, vmem_limit):
    n_rows, dp = x_p.shape
    grid = (pl.cdiv(n_rows, tm), dp // tn)
    return pl.pallas_call(
        _single_layer_kernel,
        out_shape=jax.ShapeDtypeStruct((n_rows, dp), x_p.dtype),
        grid=grid,
        in_specs=[
            pl.BlockSpec((tm, dp), lambda i, j: (i, 0)),
            pl.BlockSpec((dp, tn), lambda i, j: (0, j)),
            pl.BlockSpec((1, tn), lambda i, j: (0, j)),
        ],
        out_specs=pl.BlockSpec((tm, tn), lambda i, j: (i, j)),
        compiler_params=pltpu.CompilerParams(
            dimension_semantics=("parallel", "parallel"),
            vmem_limit_bytes=vmem_limit),
    )(x_p, w, b)


# ----------------------------------------------------------------------------- params / forward

def init_linear_encoder_params(key, input_dim, output_dim, num_layers=1, bias=True):
    """PyTorch nn.Linear default init: U(-1/sqrt(fan_in), 1/sqrt(fan_in)) for W and b.
    Returns a list of (W, b) in PyTorch layout: W (out, in), b (out,)."""
    params = []
    bound = 1.0 / (input_dim ** 0.5)
    for _ in range(num_layers):
        key, kw, kb = jax.random.split(key, 3)
        w = jax.random.uniform(kw, (output_dim, input_dim), jnp.float32, -bound, bound)
        b = (jax.random.uniform(kb, (output_dim,), jnp.float32, -bound, bound)
             if bias else jnp.zeros((output_dim,), jnp.float32))
        params.append((w, b))
    return params


def pack_encoder_params(params):
    """One-time host-side packing (hoisted out of the forward path): W.T stacked to
    (L, Dp, Dp) bf16, biases to (L, 1, Dp) f32, feature dims zero-padded to a lane-dense
    multiple of 128."""
    num_layers = len(params)
    d_out, d_in = params[0][0].shape
    if num_layers > 1:
        # The PyTorch module only composes if output_dim == input_dim.
        assert d_in == d_out, "stacked Linear(input_dim, output_dim) requires input_dim == output_dim"
    dp = _round_up(max(d_in, d_out, 128), 128)
    ws, bs = [], []
    for (w, b) in params:
        o, i = w.shape
        wt = jnp.zeros((dp, dp), jnp.float32).at[:i, :o].set(w.T.astype(jnp.float32))
        ws.append(wt.astype(jnp.bfloat16))
        bs.append(jnp.zeros((1, dp), jnp.float32).at[0, :o].set(b.astype(jnp.float32)))
    return {
        "w": jnp.stack(ws),          # (L, Dp, Dp) bf16, stores W.T per layer
        "b": jnp.stack(bs),          # (L, 1, Dp) f32
        "d_in": d_in, "d_out": d_out, "dp": dp, "num_layers": num_layers,
    }


def linear_encoder_forward(x, packed):
    """Apply the packed LinearEncoder stack to x (N, d_in); same semantics as
    LinearEncoder.forward applied to batch.x. The whole stack runs as one fused Pallas
    kernel when the weight stack fits resident in VMEM, otherwise per-layer tiled calls."""
    n, d_in = x.shape
    assert d_in == packed["d_in"]
    dp, num_layers, d_out = packed["dp"], packed["num_layers"], packed["d_out"]

    # Only pad the feature axis; rows are handled by a cdiv grid with a partial last tile.
    x_p = x if d_in == dp else jnp.pad(x, ((0, 0), (0, dp - d_in)))

    budget, limit = _vmem_budget()
    fixed = num_layers * dp * dp * 2 + num_layers * dp * 4   # resident bf16 W + f32 b

    if fixed <= budget // 2:
        tm = _choose_row_tile(n, dp, num_layers, budget)
        try:
            out_p = _fused_encoder_call(x_p, packed["w"], packed["b"],
                                        num_layers, tm, limit, True)
        except Exception:
            # Safety net if single-buffering via pl.Buffered(1) is rejected by this jax build.
            out_p = _fused_encoder_call(x_p, packed["w"], packed["b"],
                                        num_layers, tm, limit, False)
    else:
        # Weight stack too large to keep fully resident (e.g. very large Dp on v7x's 64 MiB
        # VMEM): fall back to per-layer matmuls tiled over rows x output features.
        # TODO(synk): add K-tiling (pltpu.emit_pipeline) for Dp where even one (Dp, TN)
        # weight slab plus a (TM, Dp) activation tile does not fit in VMEM.
        tn = 512 if dp % 512 == 0 else (256 if dp % 256 == 0 else 128)
        tm = max(8, min(512, _round_up(n, 8)))
        if n > 8 and pl.cdiv(n, tm) < 2:
            tm = max(8, _round_up(pl.cdiv(n, 2), 8))
        out_p = x_p
        for l in range(num_layers):
            out_p = _single_layer_call(out_p, packed["w"][l], packed["b"][l], tm, tn, limit)

    return out_p[:n, :d_out]


# ----------------------------------------------------------------------------- demo / test

if __name__ == "__main__":
    # Small shapes consistent with the module: batch.x is (num_nodes, input_dim).
    num_nodes, input_dim, output_dim, num_layers = 20, 32, 32, 2

    key = jax.random.PRNGKey(0)
    key, kx = jax.random.split(key)
    x = jax.random.normal(kx, (num_nodes, input_dim), jnp.float32)
    params = init_linear_encoder_params(key, input_dim, output_dim, num_layers, bias=True)

    packed = pack_encoder_params(params)     # hoisted, one-time host-side packing
    y = linear_encoder_forward(x, packed)
    y = jax.block_until_ready(y)

    # Layer-by-layer f32 reference (same semantics as LinearEncoder.forward).
    y_ref = x
    for w, b in params:
        y_ref = y_ref @ w.T + b

    assert y.shape == (num_nodes, output_dim)
    # bf16 MXU operands with f32 accumulation -> small deviation from the pure-f32 reference.
    assert jnp.allclose(y, y_ref, atol=3e-2, rtol=3e-2), "mismatch vs reference"
    print("KERNEL_OK")
</pallas_src>

<mosaic_0001>
module attributes {stable_mosaic.version = 11 : i64} {
  func.func @kernel(%arg0: i32, %arg1: memref<16x128xf32, #tpu.memory_space<vmem>>, %arg2: memref<2x128x128xbf16, #tpu.memory_space<vmem>>, %arg3: memref<2x1x128xf32, #tpu.memory_space<vmem>>, %arg4: memref<16x128xf32, #tpu.memory_space<vmem>>) attributes {dimension_semantics = [#tpu.dimension_semantics<parallel>], iteration_bounds = array<i64: 2>, scalar_prefetch = 0 : i64, scratch_operands = 0 : i64, tpu.core_type = #tpu.core_type<tc>, window_params = [{transform_indices = @transform_0, window_bounds = array<i64: 16, 128>}, {pipeline_mode = #tpu.pipeline_mode<synchronous>, transform_indices = @transform_1, window_bounds = array<i64: 2, 128, 128>}, {pipeline_mode = #tpu.pipeline_mode<synchronous>, transform_indices = @transform_2, window_bounds = array<i64: 2, 1, 128>}, {transform_indices = @transform_3, window_bounds = array<i64: 16, 128>}]} {
    %c0 = arith.constant 0 : index
    %c0_0 = arith.constant 0 : index
    %0 = vector.load %arg1[%c0, %c0_0] : memref<16x128xf32, #tpu.memory_space<vmem>>, vector<16x128xf32>
    %1 = arith.truncf %0 : vector<16x128xf32> to vector<16x128xbf16>
    %c0_1 = arith.constant 0 : index
    %c0_2 = arith.constant 0 : index
    %c0_3 = arith.constant 0 : index
    %2 = vector.load %arg2[%c0_1, %c0_2, %c0_3] : memref<2x128x128xbf16, #tpu.memory_space<vmem>>, vector<1x128x128xbf16>
    %3 = vector.shape_cast %2 : vector<1x128x128xbf16> to vector<128x128xbf16>
    %cst = arith.constant dense<0.000000e+00> : vector<16x128xf32>
    %4 = tpu.matmul %1, %3, %cst {dimension_numbers = #tpu.dot_dimension_numbers<[1], [0], [0], [1], [0, 0, 1, 1], [], []>} : vector<16x128xbf16>, vector<128x128xbf16>, vector<16x128xf32> -> vector<16x128xf32>
    %c0_4 = arith.constant 0 : index
    %c0_5 = arith.constant 0 : index
    %c0_6 = arith.constant 0 : index
    %5 = vector.load %arg3[%c0_4, %c0_5, %c0_6] : memref<2x1x128xf32, #tpu.memory_space<vmem>>, vector<1x1x128xf32>
    %6 = vector.shape_cast %5 : vector<1x1x128xf32> to vector<1x128xf32>
    %7 = vector.broadcast %6 : vector<1x128xf32> to vector<16x128xf32>
    %8 = arith.addf %4, %7 : vector<16x128xf32>
    %9 = arith.truncf %8 : vector<16x128xf32> to vector<16x128xbf16>
    %c1 = arith.constant 1 : index
    %c0_7 = arith.constant 0 : index
    %c0_8 = arith.constant 0 : index
    %10 = vector.load %arg2[%c1, %c0_7, %c0_8] : memref<2x128x128xbf16, #tpu.memory_space<vmem>>, vector<1x128x128xbf16>
    %11 = vector.shape_cast %10 : vector<1x128x128xbf16> to vector<128x128xbf16>
    %cst_9 = arith.constant dense<0.000000e+00> : vector<16x128xf32>
    %12 = tpu.matmul %9, %11, %cst_9 {dimension_numbers = #tpu.dot_dimension_numbers<[1], [0], [0], [1], [0, 0, 1, 1], [], []>} : vector<16x128xbf16>, vector<128x128xbf16>, vector<16x128xf32> -> vector<16x128xf32>
    %c1_10 = arith.constant 1 : index
    %c0_11 = arith.constant 0 : index
    %c0_12 = arith.constant 0 : index
    %13 = vector.load %arg3[%c1_10, %c0_11, %c0_12] : memref<2x1x128xf32, #tpu.memory_space<vmem>>, vector<1x1x128xf32>
    %14 = vector.shape_cast %13 : vector<1x1x128xf32> to vector<1x128xf32>
    %15 = vector.broadcast %14 : vector<1x128xf32> to vector<16x128xf32>
    %16 = arith.addf %12, %15 : vector<16x128xf32>
    %c0_13 = arith.constant 0 : index
    %c0_14 = arith.constant 0 : index
    %17 = vector.load %arg4[%c0_13, %c0_14] : memref<16x128xf32, #tpu.memory_space<vmem>>, vector<16x128xf32>
    tpu.vector_store %arg4[%c0_13, %c0_14], %16 {strides = array<i32>} : memref<16x128xf32, #tpu.memory_space<vmem>>, vector<16x128xf32>,
    return
  }
  func.func @transform_0(%arg0: i32) -> (i32, i32) {
    %c0_i32 = arith.constant 0 : i32
    %c0_i32_0 = arith.constant 0 : i32
    return %arg0, %c0_i32 : i32, i32
  }
  func.func @transform_1(%arg0: i32) -> (i32, i32, i32) {
    %c0_i32 = arith.constant 0 : i32
    %c0_i32_0 = arith.constant 0 : i32
    %c0_i32_1 = arith.constant 0 : i32
    %c0_i32_2 = arith.constant 0 : i32
    return %c0_i32, %c0_i32_0, %c0_i32_1 : i32, i32, i32
  }
  func.func @transform_2(%arg0: i32) -> (i32, i32, i32) {
    %c0_i32 = arith.constant 0 : i32
    %c0_i32_0 = arith.constant 0 : i32
    %c0_i32_1 = arith.constant 0 : i32
    %c0_i32_2 = arith.constant 0 : i32
    return %c0_i32, %c0_i32_0, %c0_i32_1 : i32, i32, i32
  }
  func.func @transform_3(%arg0: i32) -> (i32, i32) {
    %c0_i32 = arith.constant 0 : i32
    %c0_i32_0 = arith.constant 0 : i32
    return %arg0, %c0_i32 : i32, i32
  }
}

module attributes {stable_mosaic.version = 11 : i64} {
  func.func @kernel(%arg0: i32, %arg1: memref<16x128xf32, #tpu.memory_space<vmem>>, %arg2: memref<2x128x128xbf16, #tpu.memory_space<vmem>>, %arg3: memref<2x1x128xf32, #tpu.memory_space<vmem>>, %arg4: memref<16x128xf32, #tpu.memory_space<vmem>>) attributes {dimension_semantics = [#tpu.dimension_semantics<parallel>], iteration_bounds = array<i64: 2>, scalar_prefetch = 0 : i64, scratch_operands = 0 : i64, tpu.core_type = #tpu.core_type<tc>, window_params = [{transform_indices = @transform_0, window_bounds = array<i64: 16, 128>}, {pipeline_mode = #tpu.pipeline_mode<synchronous>, transform_indices = @transform_1, window_bounds = array<i64: 2, 128, 128>}, {pipeline_mode = #tpu.pipeline_mode<synchronous>, transform_indices = @transform_2, window_bounds = array<i64: 2, 1, 128>}, {transform_indices = @transform_3, window_bounds = array<i64: 16, 128>}]} {
    %c0 = arith.constant 0 : index
    %c0_0 = arith.constant 0 : index
    %0 = vector.load %arg1[%c0, %c0_0] : memref<16x128xf32, #tpu.memory_space<vmem>>, vector<16x128xf32>
    %1 = arith.truncf %0 : vector<16x128xf32> to vector<16x128xbf16>
    %c0_1 = arith.constant 0 : index
    %c0_2 = arith.constant 0 : index
    %c0_3 = arith.constant 0 : index
    %2 = vector.load %arg2[%c0_1, %c0_2, %c0_3] : memref<2x128x128xbf16, #tpu.memory_space<vmem>>, vector<1x128x128xbf16>
    %3 = vector.shape_cast %2 : vector<1x128x128xbf16> to vector<128x128xbf16>
    %cst = arith.constant dense<0.000000e+00> : vector<16x128xf32>
    %4 = tpu.matmul %1, %3, %cst {dimension_numbers = #tpu.dot_dimension_numbers<[1], [0], [0], [1], [0, 0, 1, 1], [], []>} : vector<16x128xbf16>, vector<128x128xbf16>, vector<16x128xf32> -> vector<16x128xf32>
    %c0_4 = arith.constant 0 : index
    %c0_5 = arith.constant 0 : index
    %c0_6 = arith.constant 0 : index
    %5 = vector.load %arg3[%c0_4, %c0_5, %c0_6] : memref<2x1x128xf32, #tpu.memory_space<vmem>>, vector<1x1x128xf32>
    %6 = vector.shape_cast %5 : vector<1x1x128xf32> to vector<1x128xf32>
    %7 = vector.broadcast %6 : vector<1x128xf32> to vector<16x128xf32>
    %8 = arith.addf %4, %7 : vector<16x128xf32>
    %9 = arith.truncf %8 : vector<16x128xf32> to vector<16x128xbf16>
    %c1 = arith.constant 1 : index
    %c0_7 = arith.constant 0 : index
    %c0_8 = arith.constant 0 : index
    %10 = vector.load %arg2[%c1, %c0_7, %c0_8] : memref<2x128x128xbf16, #tpu.memory_space<vmem>>, vector<1x128x128xbf16>
    %11 = vector.shape_cast %10 : vector<1x128x128xbf16> to vector<128x128xbf16>
    %cst_9 = arith.constant dense<0.000000e+00> : vector<16x128xf32>
    %12 = tpu.matmul %9, %11, %cst_9 {dimension_numbers = #tpu.dot_dimension_numbers<[1], [0], [0], [1], [0, 0, 1, 1], [], []>} : vector<16x128xbf16>, vector<128x128xbf16>, vector<16x128xf32> -> vector<16x128xf32>
    %c1_10 = arith.constant 1 : index
    %c0_11 = arith.constant 0 : index
    %c0_12 = arith.constant 0 : index
    %13 = vector.load %arg3[%c1_10, %c0_11, %c0_12] : memref<2x1x128xf32, #tpu.memory_space<vmem>>, vector<1x1x128xf32>
    %14 = vector.shape_cast %13 : vector<1x1x128xf32> to vector<1x128xf32>
    %15 = vector.broadcast %14 : vector<1x128xf32> to vector<16x128xf32>
    %16 = arith.addf %12, %15 : vector<16x128xf32>
    %c0_13 = arith.constant 0 : index
    %c0_14 = arith.constant 0 : index
    %17 = vector.load %arg4[%c0_13, %c0_14] : memref<16x128xf32, #tpu.memory_space<vmem>>, vector<16x128xf32>
    tpu.vector_store %arg4[%c0_13, %c0_14], %16 {strides = array<i32>} : memref<16x128xf32, #tpu.memory_space<vmem>>, vector<16x128xf32>,
    return
  }
  func.func @transform_0(%arg0: i32) -> (i32, i32) {
    %c0_i32 = arith.constant 0 : i32
    %c0_i32_0 = arith.constant 0 : i32
    return %arg0, %c0_i32 : i32, i32
  }
  func.func @transform_1(%arg0: i32) -> (i32, i32, i32) {
    %c0_i32 = arith.constant 0 : i32
    %c0_i32_0 = arith.constant 0 : i32
    %c0_i32_1 = arith.constant 0 : i32
    %c0_i32_2 = arith.constant 0 : i32
    return %c0_i32, %c0_i32_0, %c0_i32_1 : i32, i32, i32
  }
  func.func @transform_2(%arg0: i32) -> (i32, i32, i32) {
    %c0_i32 = arith.constant 0 : i32
    %c0_i32_0 = arith.constant 0 : i32
    %c0_i32_1 = arith.constant 0 : i32
    %c0_i32_2 = arith.constant 0 : i32
    return %c0_i32, %c0_i32_0, %c0_i32_1 : i32, i32, i32
  }
  func.func @transform_3(%arg0: i32) -> (i32, i32) {
    %c0_i32 = arith.constant 0 : i32
    %c0_i32_0 = arith.constant 0 : i32
    return %arg0, %c0_i32 : i32, i32
  }
}

</mosaic_0001>

<llo_original>
// kernel: _fused_encoder_call.1
$region0: #{_fused_encoder_call.1}
  #allocation0 [shape = 'u32[]', space=smem, size = 0x4, offset = 0x4, fixed_abs, tag = 'smem constant byte address 0x4 - core index']
  #allocation1 [shape = 'u32[144,128]{1,0:T(1,128)}', space=vmem, size = 0x12000, scoped, tag = 'internal scratch']
  %s0 = inlined_call_operand.hbm [shape: f32[20,128], index: 0, kind: input, shape index: {}]
  %s1 = inlined_call_operand.hbm [shape: bf16[2,128,128], index: 1, kind: input, shape index: {}]
  %s2 = inlined_call_operand.vmem [shape: f32[2,1,128], index: 2, kind: input, shape index: {}]
  %s3 = inlined_call_operand.hbm [shape: f32[20,128], index: 3, kind: output, shape index: {}]
  %s4 = sld [smem:[#allocation0]]
  $region53: #{_fused_encoder_call.1} parent=0
    _
  %s6 = ssub.s32 1, %s4
  %s7 = scalar_select 0, %s6, %s4
  $region1: #{_fused_encoder_call.1} parent=0
    #allocation2 [shape = 'u8[16384]{0}', space=vmem, size = 0x4000, scoped, tag = 'input window, operand 0']
    #allocation3 [shape = 's32[2]{0}', space=sflag, size = 0x8, scoped, tag = 'scoped memory for _fused_encoder_call.1']
    #allocation4 [shape = 's32[2]{0}', space=sflag, size = 0x8, scoped, tag = 'scoped memory for _fused_encoder_call.1']
    #allocation5 [shape = 'u8[65536]{0}', space=vmem, size = 0x10000, scoped, tag = 'input window, operand 1, single buffered']
    #allocation6 [shape = 's32[1]{0}', space=sflag, size = 0x4, scoped, tag = 'scoped memory for _fused_encoder_call.1']
    #allocation7 [shape = 'u8[16384]{0}', space=vmem, size = 0x4000, scoped, tag = 'output window, operand 0']
    %8 = vsyncpa [#allocation3], 0
    %s9 = scalar_lea.sflag [#allocation3], 1
    %10 = vsyncpa %s9, 0
    %11 = vsyncpa [#allocation6], 0
    %12 = vsyncpa [#allocation4], 0
    %s13 = scalar_lea.sflag [#allocation4], 1
    %14 = vsyncpa %s13, 0
    loop: start=0, step=1, limit=4
    $region2: #{_fused_encoder_call.1} parent=1 // loop_pre_header
      _
    $region3: #{_fused_encoder_call.1} parent=1 // loop_header
      %s16 = sphi 0, %s20
      %p17 = scmp.ge.s32.totalorder %s16, 4
      %s26 = sphi 0, %s28
      %s29 = sphi 0, %s26
      %s30 = sphi 0, %s29
      %s46 = sphi 0, %s30
      %s50 = sphi 0, %s50
      %s52 = sphi 0, %s50
      %s53 = sphi 0, %s52
      %s67 = sphi 0, %s53
      %s71 = sphi 0, %s71
      %s73 = sphi 0, %s71
      %s74 = sphi 0, %s73
      %s88 = sphi 0, %s74
      %s94 = sphi 0, %s96
      %s97 = sphi 0, %s94
      %s98 = sphi 0, %s97
      %s114 = sphi 0, %s98
    $region4: #{_fused_encoder_call.1} parent=1 // loop_header_branch
      %19 = sbr.rel (%p17) target = $region8
    $region5: #{_fused_encoder_call.1} parent=1 // loop_body
      %s21 = ssub.s32 %s16, 1
      %s22 = ssub.s32 %s16, 2
      %s23 = sadd.s32 %s16, 1
      %s24 = ssub.s32 %s16, %s23
      %p25 = scmp.eq.s32.totalorder %s24, 0
      %s27 = sadd.s32 %s26, 1
      %s28 = scalar_select %p25, %s26, %s27
      %p31 = pneg %p25
      %p32 = scmp.eq.s32.totalorder %s16, 1
      %p33 = por %p31, %p32
      %p34 = scmp.ne.s32.totalorder %s26, %s29
      %p35 = scmp.eq.s32.totalorder %s16, 0
      %p36 = por %p34, %p35
      %p37 = scmp.ne.s32.totalorder %s26, %s29
      %p38 = scmp.eq.s32.totalorder %s21, 1
      %p39 = por %p37, %p38
      %p40 = scmp.ne.s32.totalorder %s29, %s30
      %p41 = scmp.eq.s32.totalorder %s21, 0
      %p42 = por %p40, %p41
      %p43 = scmp.ne.s32.totalorder %s29, %s30
      %p44 = scmp.eq.s32.totalorder %s22, 1
      %p45 = por %p43, %p44
      %p47 = scmp.ne.s32.totalorder %s30, %s46
      %p48 = scmp.eq.s32.totalorder %s22, 0
      %p49 = por %p47, %p48
      %s51 = sadd.s32 %s50, 1
      %p54 = scmp.eq.s32.totalorder %s16, 1
      %p55 = scmp.ne.s32.totalorder %s50, %s52
      %p56 = scmp.eq.s32.totalorder %s16, 0
      %p57 = por %p55, %p56
      %p58 = scmp.ne.s32.totalorder %s50, %s52
      %p59 = scmp.eq.s32.totalorder %s21, 1
      %p60 = por %p58, %p59
      %p61 = scmp.ne.s32.totalorder %s52, %s53
      %p62 = scmp.eq.s32.totalorder %s21, 0
      %p63 = por %p61, %p62
      %p64 = scmp.ne.s32.totalorder %s52, %s53
      %p65 = scmp.eq.s32.totalorder %s22, 1
      %p66 = por %p64, %p65
      %p68 = scmp.ne.s32.totalorder %s53, %s67
      %p69 = scmp.eq.s32.totalorder %s22, 0
      %p70 = por %p68, %p69
      %s72 = sadd.s32 %s71, 1
      %p75 = scmp.eq.s32.totalorder %s16, 1
      %p76 = scmp.ne.s32.totalorder %s71, %s73
      %p77 = scmp.eq.s32.totalorder %s16, 0
      %p78 = por %p76, %p77
      %p79 = scmp.ne.s32.totalorder %s71, %s73
      %p80 = scmp.eq.s32.totalorder %s21, 1
      %p81 = por %p79, %p80
      %p82 = scmp.ne.s32.totalorder %s73, %s74
      %p83 = scmp.eq.s32.totalorder %s21, 0
      %p84 = por %p82, %p83
      %p85 = scmp.ne.s32.totalorder %s73, %s74
      %p86 = scmp.eq.s32.totalorder %s22, 1
      %p87 = por %p85, %p86
      %p89 = scmp.ne.s32.totalorder %s74, %s88
      %p90 = scmp.eq.s32.totalorder %s22, 0
      %p91 = por %p89, %p90
      %s92 = ssub.s32 %s16, %s23
      %p93 = scmp.eq.s32.totalorder %s92, 0
      %s95 = sadd.s32 %s94, 1
      %s96 = scalar_select %p93, %s94, %s95
      %p99 = pneg %p93
      %p100 = scmp.eq.s32.totalorder %s16, 1
      %p101 = por %p99, %p100
      %p102 = scmp.ne.s32.totalorder %s94, %s97
      %p103 = scmp.eq.s32.totalorder %s16, 0
      %p104 = por %p102, %p103
      %p105 = scmp.ne.s32.totalorder %s94, %s97
      %p106 = scmp.eq.s32.totalorder %s21, 1
      %p107 = por %p105, %p106
      %p108 = scmp.ne.s32.totalorder %s97, %s98
      %p109 = scmp.eq.s32.totalorder %s21, 0
      %p110 = por %p108, %p109
      %p111 = scmp.ne.s32.totalorder %s97, %s98
      %p112 = scmp.eq.s32.totalorder %s22, 1
      %p113 = por %p111, %p112
      %p115 = scmp.ne.s32.totalorder %s98, %s114
      %p116 = scmp.eq.s32.totalorder %s22, 0
      %p117 = por %p115, %p116
      %p118 = scmp.le.s32.totalorder 1, %s16
      %p119 = scmp.lt.s32.totalorder %s16, 3
      %p120 = pnand %p118, %p119
      %p121 = pneg %p120
      // Predicated region
      $region9: #{_fused_encoder_call.1} parent=5 // pred_check
        _
      $region10: #{_fused_encoder_call.1} parent=5 // pred_check_branch
        %123 = sbr.rel (%p120) target = $region12
      $region11: #{_fused_encoder_call.1} parent=5 // pred_region
        %s124 = ssub.s32 %s16, 1
        // Predicated region
        $region13: #{_fused_encoder_call.1} parent=11 // pred_check
          %p125 = pneg %p63
        $region14: #{_fused_encoder_call.1} parent=11 // pred_check_branch
          %127 = sbr.rel (%p125) target = $region16
        $region15: #{_fused_encoder_call.1} parent=11 // pred_region
          %s129 = ssub.s32 2048, 2048
          %130 = vsyncadd [#allocation6], %s129
          %s131 = sshll.u32 [#allocation5], 4
          %s132 = int_to_ptr.vmem [resolvable:$true] %s131
          %137 = dma.hbm_to_vmem [thread:$0]  %s1, 2048, %s132, [#allocation6], 64, 64, 4
        $region16: #{_fused_encoder_call.1} parent=11 // pred_fallthru
          _
        // Predicated region
        $region17: #{_fused_encoder_call.1} parent=11 // pred_check
          %p138 = pneg %p84
        $region18: #{_fused_encoder_call.1} parent=11 // pred_check_branch
          %140 = sbr.rel (%p138) target = $region20
        $region19: #{_fused_encoder_call.1} parent=11 // pred_region
          _
        $region20: #{_fused_encoder_call.1} parent=11 // pred_fallthru
          _
      $region12: #{_fused_encoder_call.1} parent=5 // pred_fallthru
        _
      %p141 = scmp.lt.s32.totalorder %s16, 2
      // Predicated region
      $region21: #{_fused_encoder_call.1} parent=5 // pred_check
        %p142 = pneg %p141
      $region22: #{_fused_encoder_call.1} parent=5 // pred_check_branch
        %144 = sbr.rel (%p142) target = $region24
      $region23: #{_fused_encoder_call.1} parent=5 // pred_region
        // Predicated region
        $region25: #{_fused_encoder_call.1} parent=23 // pred_check
          %p145 = pneg %p36
        $region26: #{_fused_encoder_call.1} parent=23 // pred_check_branch
          %147 = sbr.rel (%p145) target = $region28
        $region27: #{_fused_encoder_call.1} parent=23 // pred_region
          %s148 = sand.u32 %s26, 1
          %s149 = scalar_lea.sflag [#allocation3], %s148
          %s150 = sand.u32 %s26, 1
          %s151 = smul.addr %s150, 16
          %s152 = scalar_lea.vmem [#allocation2], %s151
          %s153 = smul.u32 2, %s16
          %s154 = ssub.s32 3, %s153
          %p155 = scmp.lt.s32.totalorder %s154, 2
          %s156 = scalar_select %p155, %s154, 2
          %s157 = smul.u32 128, %s156
          %s159 = ssub.s32 256, %s157
          %160 = vsyncadd %s149, %s159
          %p161 = scmp.ne.s32.totalorder 0, %s157
          %s162 = smul.addr %s153, 128
          %s163 = scalar_lea.hbm %s0, %s162
          %s164 = smul.u32 8, %s156
          %s165 = sshll.u32 %s152, 4
          %s166 = int_to_ptr.vmem [resolvable:$true] %s165
          %s167 = sshll.u32 %s164, 4
          %171 = dma.hbm_to_vmem [thread:$0]  (%p161), %s163, %s167, %s166, %s149, 128, 128, 8
        $region28: #{_fused_encoder_call.1} parent=23 // pred_fallthru
          _
      $region24: #{_fused_encoder_call.1} parent=5 // pred_fallthru
        _
      %p172 = scmp.le.s32.totalorder 1, %s16
      %p173 = scmp.lt.s32.totalorder %s16, 3
      %p174 = pnand %p172, %p173
      %p175 = pneg %p174
      // Predicated region
      $region29: #{_fused_encoder_call.1} parent=5 // pred_check
        _
      $region30: #{_fused_encoder_call.1} parent=5 // pred_check_branch
        %177 = sbr.rel (%p174) target = $region32
      $region31: #{_fused_encoder_call.1} parent=5 // pred_region
        %s178 = ssub.s32 %s16, 1
        %s179 = sand.u32 %s29, 1
        %s180 = scalar_lea.sflag [#allocation3], %s179
        %s181 = sand.u32 %s29, 1
        %s182 = smul.addr %s181, 16
        %s183 = scalar_lea.vmem [#allocation2], %s182
        // Predicated region
        $region33: #{_fused_encoder_call.1} parent=31 // pred_check
          %p184 = pneg %p42
        $region34: #{_fused_encoder_call.1} parent=31 // pred_check_branch
          %186 = sbr.rel (%p184) target = $region36
        $region35: #{_fused_encoder_call.1} parent=31 // pred_region
          %187 = dma.done %s180, 256
        $region36: #{_fused_encoder_call.1} parent=31 // pred_fallthru
          _
        // Predicated region
        $region37: #{_fused_encoder_call.1} parent=31 // pred_check
          %p188 = pneg %p63
        $region38: #{_fused_encoder_call.1} parent=31 // pred_check_branch
          %190 = sbr.rel (%p188) target = $region40
        $region39: #{_fused_encoder_call.1} parent=31 // pred_region
          %191 = dma.done [#allocation6], 2048
        $region40: #{_fused_encoder_call.1} parent=31 // pred_fallthru
          _
        %s192 = sand.u32 %s29, 1
        %s193 = scalar_lea.sflag [#allocation3], %s192
        %s194 = sand.u32 %s29, 1
        %s195 = smul.addr %s194, 16
        %s196 = scalar_lea.vmem [#allocation2], %s195
        %p197 = pneg %p42
        %p198 = pneg %p39
        %p199 = pneg %p63
        %p200 = pneg %p60
        %p201 = pneg %p84
        %p202 = pneg %p81
        %p203 = pneg %p110
        %p204 = pneg %p107
        %s205 = sand.u32 %s97, 1
        %s206 = scalar_lea.sflag [#allocation4], %s205
        %s207 = sand.u32 %s97, 1
        %s208 = smul.addr %s207, 16
        %s209 = scalar_lea.vmem [#allocation7], %s208
        %s210 = smul.u32 2, %s21
        %s211 = ssub.s32 3, %s210
        %p212 = scmp.lt.s32.totalorder %s211, 2
        %s213 = scalar_select %p212, %s211, 2
        %s214 = smul.u32 128, %s213
        %s215 = smul.u32 2, %s21
        %s216 = ssub.s32 3, %s215
        %p217 = scmp.lt.s32.totalorder %s216, 2
        %s218 = scalar_select %p217, %s216, 2
        %s219 = smul.u32 128, %s218
        %v221 = vld [vmem:[%s183] sm:$0xff]
        %v222 = vld [vmem:[%s183 + $0x8] sm:$0xff]
        %v223 = vpack.c.bf16 %v222, %v221
        %v224 = vld [vmem:[#allocation5] sm:$0xf]
        %v225 = vld [vmem:[#allocation5 + $0x4] sm:$0xf]
        %v226 = vld [vmem:[#allocation5 + $0x8] sm:$0xf]
        %v227 = vld [vmem:[#allocation5 + $0xc] sm:$0xf]
        %v228 = vld [vmem:[#allocation5 + $0x10] sm:$0xf]
        %v229 = vld [vmem:[#allocation5 + $0x14] sm:$0xf]
        %v230 = vld [vmem:[#allocation5 + $0x18] sm:$0xf]
        %v231 = vld [vmem:[#allocation5 + $0x1c] sm:$0xf]
        %v232 = vld [vmem:[#allocation5 + $0x20] sm:$0xf]
        %v233 = vld [vmem:[#allocation5 + $0x24] sm:$0xf]
        %v234 = vld [vmem:[#allocation5 + $0x28] sm:$0xf]
        %v235 = vld [vmem:[#allocation5 + $0x2c] sm:$0xf]
        %v236 = vld [vmem:[#allocation5 + $0x30] sm:$0xf]
        %v237 = vld [vmem:[#allocation5 + $0x34] sm:$0xf]
        %v238 = vld [vmem:[#allocation5 + $0x38] sm:$0xf]
        %v239 = vld [vmem:[#allocation5 + $0x3c] sm:$0xf]
        %v240 = vld [vmem:[%s2] sm:$0x1]
        %v242 = vlaneseq
        %v243 = vshrl.u32 %v242, 7
        %v244 = vsub.s32 0, %v243
        %v245 = vrot.slane %v240, %v244
        %v263 = vunpack.c.l.b16 %v224
        %v264 = vunpack.c.l.b16 %v225
        %v265 = vunpack.c.l.b16 %v226
        %v266 = vunpack.c.l.b16 %v227
        %v267 = vunpack.c.l.b16 %v228
        %v268 = vunpack.c.l.b16 %v229
        %v269 = vunpack.c.l.b16 %v230
        %v270 = vunpack.c.l.b16 %v231
        %v271 = vunpack.c.l.b16 %v232
        %v272 = vunpack.c.l.b16 %v233
        %v273 = vunpack.c.l.b16 %v234
        %v274 = vunpack.c.l.b16 %v235
        %v275 = vunpack.c.l.b16 %v236
        %v276 = vunpack.c.l.b16 %v237
        %v277 = vunpack.c.l.b16 %v238
        %v278 = vunpack.c.l.b16 %v239
        %v279 = vpack.c.b16 %v264, %v263
        %v280 = vpack.c.b16 %v266, %v265
        %v281 = vpack.c.b16 %v268, %v267
        %v282 = vpack.c.b16 %v270, %v269
        %v283 = vpack.c.b16 %v272, %v271
        %v284 = vpack.c.b16 %v274, %v273
        %v285 = vpack.c.b16 %v276, %v275
        %v286 = vpack.c.b16 %v278, %v277
        %295 = vmatprep.subr.bf16.mxu0 0
        %296 = vmatpush1.bf16.msra.mxu0 %v279
        %297 = vmatprep.subr.bf16.mxu0 0
        %298 = vmatpush1.bf16.msra.mxu0 %v280
        %299 = vmatprep.subr.bf16.mxu0 0
        %300 = vmatpush1.bf16.msra.mxu0 %v281
        %301 = vmatprep.subr.bf16.mxu0 0
        %302 = vmatpush1.bf16.msra.mxu0 %v282
        %303 = vmatprep.subr.bf16.mxu0 0
        %304 = vmatpush1.bf16.msra.mxu0 %v283
        %305 = vmatprep.subr.bf16.mxu0 0
        %306 = vmatpush1.bf16.msra.mxu0 %v284
        %307 = vmatprep.subr.bf16.mxu0 0
        %308 = vmatpush1.bf16.msra.mxu0 %v285
        %309 = vmatprep.subr.bf16.mxu0 0
        %310 = vmatpush1.bf16.msra.mxu0 %v286
        %311 = vmatprep.subr.bf16.mxu0 0
        %312 = vmatpush1.bf16.msra.mxu0 0
        %313 = vmatprep.subr.bf16.mxu0 0
        %314 = vmatpush1.bf16.msra.mxu0 0
        %315 = vmatprep.subr.bf16.mxu0 0
        %316 = vmatpush1.bf16.msra.mxu0 0
        %317 = vmatprep.subr.bf16.mxu0 0
        %318 = vmatpush1.bf16.msra.mxu0 0
        %319 = vmatprep.subr.bf16.mxu0 0
        %320 = vmatpush1.bf16.msra.mxu0 0
        %321 = vmatprep.subr.bf16.mxu0 0
        %322 = vmatpush1.bf16.msra.mxu0 0
        %323 = vmatprep.subr.bf16.mxu0 0
        %324 = vmatpush1.bf16.msra.mxu0 0
        %325 = vmatprep.subr.bf16.mxu0 0
        %326 = vmatpush1.bf16.msra.mxu0 0
        %327 = vmatprep.mubr.bf16.mxu0 0
        %328 = vmatmul.mubr.bf16.gmra.mrb[0].mxu0 %v223
        %v329 = vpop.f32.mrb[0].mxu0
        %v330 = vadd.f32 %v245, %v329
        %v331 = vpop.f32.mrb[0].mxu0
        %v332 = vpop.f32.mrb[0].mxu0
        %v333 = vadd.f32 %v245, %v332
        %v334 = vpop.f32.mrb[0].mxu0
        %335 = vdwg.mxu0
        %v336 = vpack.c.bf16 %v333, %v330
        %s337 = scalar_lea.vmem [#allocation5], 64
        %v338 = vld [vmem:[%s337] sm:$0xf]
        %v339 = vld [vmem:[%s337 + $0x4] sm:$0xf]
        %v340 = vld [vmem:[%s337 + $0x8] sm:$0xf]
        %v341 = vld [vmem:[%s337 + $0xc] sm:$0xf]
        %v342 = vld [vmem:[%s337 + $0x10] sm:$0xf]
        %v343 = vld [vmem:[%s337 + $0x14] sm:$0xf]
        %v344 = vld [vmem:[%s337 + $0x18] sm:$0xf]
        %v345 = vld [vmem:[%s337 + $0x1c] sm:$0xf]
        %v346 = vld [vmem:[%s337 + $0x20] sm:$0xf]
        %v347 = vld [vmem:[%s337 + $0x24] sm:$0xf]
        %v348 = vld [vmem:[%s337 + $0x28] sm:$0xf]
        %v349 = vld [vmem:[%s337 + $0x2c] sm:$0xf]
        %v350 = vld [vmem:[%s337 + $0x30] sm:$0xf]
        %v351 = vld [vmem:[%s337 + $0x34] sm:$0xf]
        %v352 = vld [vmem:[%s337 + $0x38] sm:$0xf]
        %v353 = vld [vmem:[%s337 + $0x3c] sm:$0xf]
        %s354 = scalar_lea.vmem %s2, 1
        %v355 = vld [vmem:[%s354] sm:$0x1]
        %v357 = vlaneseq
        %v358 = vshrl.u32 %v357, 7
        %v359 = vsub.s32 0, %v358
        %v360 = vrot.slane %v355, %v359
        %v378 = vunpack.c.l.b16 %v338
        %v379 = vunpack.c.l.b16 %v339
        %v380 = vunpack.c.l.b16 %v340
        %v381 = vunpack.c.l.b16 %v341
        %v382 = vunpack.c.l.b16 %v342
        %v383 = vunpack.c.l.b16 %v343
        %v384 = vunpack.c.l.b16 %v344
        %v385 = vunpack.c.l.b16 %v345
        %v386 = vunpack.c.l.b16 %v346
        %v387 = vunpack.c.l.b16 %v347
        %v388 = vunpack.c.l.b16 %v348
        %v389 = vunpack.c.l.b16 %v349
        %v390 = vunpack.c.l.b16 %v350
        %v391 = vunpack.c.l.b16 %v351
        %v392 = vunpack.c.l.b16 %v352
        %v393 = vunpack.c.l.b16 %v353
        %v394 = vpack.c.b16 %v379, %v378
        %v395 = vpack.c.b16 %v381, %v380
        %v396 = vpack.c.b16 %v383, %v382
        %v397 = vpack.c.b16 %v385, %v384
        %v398 = vpack.c.b16 %v387, %v386
        %v399 = vpack.c.b16 %v389, %v388
        %v400 = vpack.c.b16 %v391, %v390
        %v401 = vpack.c.b16 %v393, %v392
        %410 = vmatprep.subr.bf16.mxu0 0
        %411 = vmatpush1.bf16.msra.mxu0 %v394
        %412 = vmatprep.subr.bf16.mxu0 0
        %413 = vmatpush1.bf16.msra.mxu0 %v395
        %414 = vmatprep.subr.bf16.mxu0 0
        %415 = vmatpush1.bf16.msra.mxu0 %v396
        %416 = vmatprep.subr.bf16.mxu0 0
        %417 = vmatpush1.bf16.msra.mxu0 %v397
        %418 = vmatprep.subr.bf16.mxu0 0
        %419 = vmatpush1.bf16.msra.mxu0 %v398
        %420 = vmatprep.subr.bf16.mxu0 0
        %421 = vmatpush1.bf16.msra.mxu0 %v399
        %422 = vmatprep.subr.bf16.mxu0 0
        %423 = vmatpush1.bf16.msra.mxu0 %v400
        %424 = vmatprep.subr.bf16.mxu0 0
        %425 = vmatpush1.bf16.msra.mxu0 %v401
        %426 = vmatprep.subr.bf16.mxu0 0
        %427 = vmatpush1.bf16.msra.mxu0 0
        %428 = vmatprep.subr.bf16.mxu0 0
        %429 = vmatpush1.bf16.msra.mxu0 0
        %430 = vmatprep.subr.bf16.mxu0 0
        %431 = vmatpush1.bf16.msra.mxu0 0
        %432 = vmatprep.subr.bf16.mxu0 0
        %433 = vmatpush1.bf16.msra.mxu0 0
        %434 = vmatprep.subr.bf16.mxu0 0
        %435 = vmatpush1.bf16.msra.mxu0 0
        %436 = vmatprep.subr.bf16.mxu0 0
        %437 = vmatpush1.bf16.msra.mxu0 0
        %438 = vmatprep.subr.bf16.mxu0 0
        %439 = vmatpush1.bf16.msra.mxu0 0
        %440 = vmatprep.subr.bf16.mxu0 0
        %441 = vmatpush1.bf16.msra.mxu0 0
        %442 = vmatprep.mubr.bf16.mxu0 0
        %443 = vmatmul.mubr.bf16.gmra.mrb[0].mxu0 %v336
        %v444 = vpop.f32.mrb[0].mxu0
        %v445 = vadd.f32 %v360, %v444
        %v446 = vpop.f32.mrb[0].mxu0
        %v447 = vpop.f32.mrb[0].mxu0
        %v448 = vadd.f32 %v360, %v447
        %v449 = vpop.f32.mrb[0].mxu0
        %450 = vdwg.mxu0
        %451 = vst [vmem:[%s209] sm:$0xff] %v445
        %452 = vst [vmem:[%s209 + $0x8] sm:$0xff] %v448
        %s453 = sand.u32 %s97, 1
        %s454 = scalar_lea.sflag [#allocation4], %s453
        %s455 = sand.u32 %s97, 1
        %s456 = smul.addr %s455, 16
        %s457 = scalar_lea.vmem [#allocation7], %s456
        // Predicated region
        $region41: #{_fused_encoder_call.1} parent=31 // pred_check
          %p458 = pneg %p107
        $region42: #{_fused_encoder_call.1} parent=31 // pred_check_branch
          %460 = sbr.rel (%p458) target = $region44
        $region43: #{_fused_encoder_call.1} parent=31 // pred_region
          %s461 = smul.u32 2, %s21
          %s462 = ssub.s32 3, %s461
          %p463 = scmp.lt.s32.totalorder %s462, 2
          %s464 = scalar_select %p463, %s462, 2
          %s465 = smul.u32 128, %s464
          %s467 = ssub.s32 256, %s465
          %468 = vsyncadd %s454, %s467
          %p469 = scmp.ne.s32.totalorder 0, %s465
          %s470 = smul.addr %s461, 128
          %s471 = scalar_lea.hbm %s3, %s470
          %s472 = smul.u32 8, %s464
          %s473 = sshll.u32 %s457, 4
          %s474 = int_to_ptr.vmem [resolvable:$true] %s473
          %s475 = sshll.u32 %s472, 4
          %479 = dma.vmem_to_hbm [thread:$0]  (%p469), %s474, %s475, %s471, %s454, 128, 128, 8
        $region44: #{_fused_encoder_call.1} parent=31 // pred_fallthru
          _
      $region32: #{_fused_encoder_call.1} parent=5 // pred_fallthru
        _
      %p480 = scmp.le.s32.totalorder 2, %s16
      // Predicated region
      $region45: #{_fused_encoder_call.1} parent=5 // pred_check
        %p481 = pneg %p480
      $region46: #{_fused_encoder_call.1} parent=5 // pred_check_branch
        %483 = sbr.rel (%p481) target = $region48
      $region47: #{_fused_encoder_call.1} parent=5 // pred_region
        %s484 = ssub.s32 %s16, 2
        // Predicated region
        $region49: #{_fused_encoder_call.1} parent=47 // pred_check
          %p485 = pneg %p113
        $region50: #{_fused_encoder_call.1} parent=47 // pred_check_branch
          %487 = sbr.rel (%p485) target = $region52
        $region51: #{_fused_encoder_call.1} parent=47 // pred_region
          %s488 = sand.u32 %s98, 1
          %s489 = scalar_lea.sflag [#allocation4], %s488
          %s490 = sand.u32 %s98, 1
          %s491 = smul.addr %s490, 16
          %s492 = scalar_lea.vmem [#allocation7], %s491
          %493 = dma.done %s489, 256
        $region52: #{_fused_encoder_call.1} parent=47 // pred_fallthru
          _
      $region48: #{_fused_encoder_call.1} parent=5 // pred_fallthru
        _
    $region6: #{_fused_encoder_call.1} parent=1 // loop_footer
      %s20 = sadd.s32 1, %s16
    $region7: #{_fused_encoder_call.1} parent=1 // loop_footer_branch
      %15 = sbr.rel target = $region3
    $region8: #{_fused_encoder_call.1} parent=1 // loop_exit
      _
    %494 = vsyncpa [#allocation3], 1
    %s495 = scalar_lea.sflag [#allocation3], 1
    %496 = vsyncpa %s495, 1
    %497 = vsyncpa [#allocation6], 1
    %498 = vsyncpa [#allocation4], 1
    %s499 = scalar_lea.sflag [#allocation4], 1
    %500 = vsyncpa %s499, 1

// kernel: _fused_encoder_call.1
$region0: #{_fused_encoder_call.1}
  #allocation0 [shape = 'u32[]', space=smem, size = 0x4, offset = 0x4, fixed_abs, tag = 'smem constant byte address 0x4 - core index']
  #allocation1 [shape = 'u32[144,128]{1,0:T(1,128)}', space=vmem, size = 0x12000, scoped, tag = 'internal scratch']
  %s0 = inlined_call_operand.hbm [shape: f32[20,128], index: 0, kind: input, shape index: {}]
  %s1 = inlined_call_operand.hbm [shape: bf16[2,128,128], index: 1, kind: input, shape index: {}]
  %s2 = inlined_call_operand.vmem [shape: f32[2,1,128], index: 2, kind: input, shape index: {}]
  %s3 = inlined_call_operand.hbm [shape: f32[20,128], index: 3, kind: output, shape index: {}]
  %s4 = sld [smem:[#allocation0]]
  $region53: #{_fused_encoder_call.1} parent=0
    _
  %s6 = ssub.s32 1, %s4
  %s7 = scalar_select 0, %s6, %s4
  $region1: #{_fused_encoder_call.1} parent=0
    #allocation2 [shape = 'u8[16384]{0}', space=vmem, size = 0x4000, scoped, tag = 'input window, operand 0']
    #allocation3 [shape = 's32[2]{0}', space=sflag, size = 0x8, scoped, tag = 'scoped memory for _fused_encoder_call.1']
    #allocation4 [shape = 's32[2]{0}', space=sflag, size = 0x8, scoped, tag = 'scoped memory for _fused_encoder_call.1']
    #allocation5 [shape = 'u8[65536]{0}', space=vmem, size = 0x10000, scoped, tag = 'input window, operand 1, single buffered']
    #allocation6 [shape = 's32[1]{0}', space=sflag, size = 0x4, scoped, tag = 'scoped memory for _fused_encoder_call.1']
    #allocation7 [shape = 'u8[16384]{0}', space=vmem, size = 0x4000, scoped, tag = 'output window, operand 0']
    %8 = vsyncpa [#allocation3], 0
    %s9 = scalar_lea.sflag [#allocation3], 1
    %10 = vsyncpa %s9, 0
    %11 = vsyncpa [#allocation6], 0
    %12 = vsyncpa [#allocation4], 0
    %s13 = scalar_lea.sflag [#allocation4], 1
    %14 = vsyncpa %s13, 0
    loop: start=0, step=1, limit=4
    $region2: #{_fused_encoder_call.1} parent=1 // loop_pre_header
      _
    $region3: #{_fused_encoder_call.1} parent=1 // loop_header
      %s16 = sphi 0, %s20
      %p17 = scmp.ge.s32.totalorder %s16, 4
      %s26 = sphi 0, %s28
      %s29 = sphi 0, %s26
      %s30 = sphi 0, %s29
      %s46 = sphi 0, %s30
      %s50 = sphi 0, %s50
      %s52 = sphi 0, %s50
      %s53 = sphi 0, %s52
      %s67 = sphi 0, %s53
      %s71 = sphi 0, %s71
      %s73 = sphi 0, %s71
      %s74 = sphi 0, %s73
      %s88 = sphi 0, %s74
      %s94 = sphi 0, %s96
      %s97 = sphi 0, %s94
      %s98 = sphi 0, %s97
      %s114 = sphi 0, %s98
    $region4: #{_fused_encoder_call.1} parent=1 // loop_header_branch
      %19 = sbr.rel (%p17) target = $region8
    $region5: #{_fused_encoder_call.1} parent=1 // loop_body
      %s21 = ssub.s32 %s16, 1
      %s22 = ssub.s32 %s16, 2
      %s23 = sadd.s32 %s16, 1
      %s24 = ssub.s32 %s16, %s23
      %p25 = scmp.eq.s32.totalorder %s24, 0
      %s27 = sadd.s32 %s26, 1
      %s28 = scalar_select %p25, %s26, %s27
      %p31 = pneg %p25
      %p32 = scmp.eq.s32.totalorder %s16, 1
      %p33 = por %p31, %p32
      %p34 = scmp.ne.s32.totalorder %s26, %s29
      %p35 = scmp.eq.s32.totalorder %s16, 0
      %p36 = por %p34, %p35
      %p37 = scmp.ne.s32.totalorder %s26, %s29
      %p38 = scmp.eq.s32.totalorder %s21, 1
      %p39 = por %p37, %p38
      %p40 = scmp.ne.s32.totalorder %s29, %s30
      %p41 = scmp.eq.s32.totalorder %s21, 0
      %p42 = por %p40, %p41
      %p43 = scmp.ne.s32.totalorder %s29, %s30
      %p44 = scmp.eq.s32.totalorder %s22, 1
      %p45 = por %p43, %p44
      %p47 = scmp.ne.s32.totalorder %s30, %s46
      %p48 = scmp.eq.s32.totalorder %s22, 0
      %p49 = por %p47, %p48
      %s51 = sadd.s32 %s50, 1
      %p54 = scmp.eq.s32.totalorder %s16, 1
      %p55 = scmp.ne.s32.totalorder %s50, %s52
      %p56 = scmp.eq.s32.totalorder %s16, 0
      %p57 = por %p55, %p56
      %p58 = scmp.ne.s32.totalorder %s50, %s52
      %p59 = scmp.eq.s32.totalorder %s21, 1
      %p60 = por %p58, %p59
      %p61 = scmp.ne.s32.totalorder %s52, %s53
      %p62 = scmp.eq.s32.totalorder %s21, 0
      %p63 = por %p61, %p62
      %p64 = scmp.ne.s32.totalorder %s52, %s53
      %p65 = scmp.eq.s32.totalorder %s22, 1
      %p66 = por %p64, %p65
      %p68 = scmp.ne.s32.totalorder %s53, %s67
      %p69 = scmp.eq.s32.totalorder %s22, 0
      %p70 = por %p68, %p69
      %s72 = sadd.s32 %s71, 1
      %p75 = scmp.eq.s32.totalorder %s16, 1
      %p76 = scmp.ne.s32.totalorder %s71, %s73
      %p77 = scmp.eq.s32.totalorder %s16, 0
      %p78 = por %p76, %p77
      %p79 = scmp.ne.s32.totalorder %s71, %s73
      %p80 = scmp.eq.s32.totalorder %s21, 1
      %p81 = por %p79, %p80
      %p82 = scmp.ne.s32.totalorder %s73, %s74
      %p83 = scmp.eq.s32.totalorder %s21, 0
      %p84 = por %p82, %p83
      %p85 = scmp.ne.s32.totalorder %s73, %s74
      %p86 = scmp.eq.s32.totalorder %s22, 1
      %p87 = por %p85, %p86
      %p89 = scmp.ne.s32.totalorder %s74, %s88
      %p90 = scmp.eq.s32.totalorder %s22, 0
      %p91 = por %p89, %p90
      %s92 = ssub.s32 %s16, %s23
      %p93 = scmp.eq.s32.totalorder %s92, 0
      %s95 = sadd.s32 %s94, 1
      %s96 = scalar_select %p93, %s94, %s95
      %p99 = pneg %p93
      %p100 = scmp.eq.s32.totalorder %s16, 1
      %p101 = por %p99, %p100
      %p102 = scmp.ne.s32.totalorder %s94, %s97
      %p103 = scmp.eq.s32.totalorder %s16, 0
      %p104 = por %p102, %p103
      %p105 = scmp.ne.s32.totalorder %s94, %s97
      %p106 = scmp.eq.s32.totalorder %s21, 1
      %p107 = por %p105, %p106
      %p108 = scmp.ne.s32.totalorder %s97, %s98
      %p109 = scmp.eq.s32.totalorder %s21, 0
      %p110 = por %p108, %p109
      %p111 = scmp.ne.s32.totalorder %s97, %s98
      %p112 = scmp.eq.s32.totalorder %s22, 1
      %p113 = por %p111, %p112
      %p115 = scmp.ne.s32.totalorder %s98, %s114
      %p116 = scmp.eq.s32.totalorder %s22, 0
      %p117 = por %p115, %p116
      %p118 = scmp.le.s32.totalorder 1, %s16
      %p119 = scmp.lt.s32.totalorder %s16, 3
      %p120 = pnand %p118, %p119
      %p121 = pneg %p120
      // Predicated region
      $region9: #{_fused_encoder_call.1} parent=5 // pred_check
        _
      $region10: #{_fused_encoder_call.1} parent=5 // pred_check_branch
        %123 = sbr.rel (%p120) target = $region12
      $region11: #{_fused_encoder_call.1} parent=5 // pred_region
        %s124 = ssub.s32 %s16, 1
        // Predicated region
        $region13: #{_fused_encoder_call.1} parent=11 // pred_check
          %p125 = pneg %p63
        $region14: #{_fused_encoder_call.1} parent=11 // pred_check_branch
          %127 = sbr.rel (%p125) target = $region16
        $region15: #{_fused_encoder_call.1} parent=11 // pred_region
          %s129 = ssub.s32 2048, 2048
          %130 = vsyncadd [#allocation6], %s129
          %s131 = sshll.u32 [#allocation5], 4
          %s132 = int_to_ptr.vmem [resolvable:$true] %s131
          %137 = dma.hbm_to_vmem [thread:$0]  %s1, 2048, %s132, [#allocation6], 64, 64, 4
        $region16: #{_fused_encoder_call.1} parent=11 // pred_fallthru
          _
        // Predicated region
        $region17: #{_fused_encoder_call.1} parent=11 // pred_check
          %p138 = pneg %p84
        $region18: #{_fused_encoder_call.1} parent=11 // pred_check_branch
          %140 = sbr.rel (%p138) target = $region20
        $region19: #{_fused_encoder_call.1} parent=11 // pred_region
          _
        $region20: #{_fused_encoder_call.1} parent=11 // pred_fallthru
          _
      $region12: #{_fused_encoder_call.1} parent=5 // pred_fallthru
        _
      %p141 = scmp.lt.s32.totalorder %s16, 2
      // Predicated region
      $region21: #{_fused_encoder_call.1} parent=5 // pred_check
        %p142 = pneg %p141
      $region22: #{_fused_encoder_call.1} parent=5 // pred_check_branch
        %144 = sbr.rel (%p142) target = $region24
      $region23: #{_fused_encoder_call.1} parent=5 // pred_region
        // Predicated region
        $region25: #{_fused_encoder_call.1} parent=23 // pred_check
          %p145 = pneg %p36
        $region26: #{_fused_encoder_call.1} parent=23 // pred_check_branch
          %147 = sbr.rel (%p145) target = $region28
        $region27: #{_fused_encoder_call.1} parent=23 // pred_region
          %s148 = sand.u32 %s26, 1
          %s149 = scalar_lea.sflag [#allocation3], %s148
          %s150 = sand.u32 %s26, 1
          %s151 = smul.addr %s150, 16
          %s152 = scalar_lea.vmem [#allocation2], %s151
          %s153 = smul.u32 2, %s16
          %s154 = ssub.s32 3, %s153
          %p155 = scmp.lt.s32.totalorder %s154, 2
          %s156 = scalar_select %p155, %s154, 2
          %s157 = smul.u32 128, %s156
          %s159 = ssub.s32 256, %s157
          %160 = vsyncadd %s149, %s159
          %p161 = scmp.ne.s32.totalorder 0, %s157
          %s162 = smul.addr %s153, 128
          %s163 = scalar_lea.hbm %s0, %s162
          %s164 = smul.u32 8, %s156
          %s165 = sshll.u32 %s152, 4
          %s166 = int_to_ptr.vmem [resolvable:$true] %s165
          %s167 = sshll.u32 %s164, 4
          %171 = dma.hbm_to_vmem [thread:$0]  (%p161), %s163, %s167, %s166, %s149, 128, 128, 8
        $region28: #{_fused_encoder_call.1} parent=23 // pred_fallthru
          _
      $region24: #{_fused_encoder_call.1} parent=5 // pred_fallthru
        _
      %p172 = scmp.le.s32.totalorder 1, %s16
      %p173 = scmp.lt.s32.totalorder %s16, 3
      %p174 = pnand %p172, %p173
      %p175 = pneg %p174
      // Predicated region
      $region29: #{_fused_encoder_call.1} parent=5 // pred_check
        _
      $region30: #{_fused_encoder_call.1} parent=5 // pred_check_branch
        %177 = sbr.rel (%p174) target = $region32
      $region31: #{_fused_encoder_call.1} parent=5 // pred_region
        %s178 = ssub.s32 %s16, 1
        %s179 = sand.u32 %s29, 1
        %s180 = scalar_lea.sflag [#allocation3], %s179
        %s181 = sand.u32 %s29, 1
        %s182 = smul.addr %s181, 16
        %s183 = scalar_lea.vmem [#allocation2], %s182
        // Predicated region
        $region33: #{_fused_encoder_call.1} parent=31 // pred_check
          %p184 = pneg %p42
        $region34: #{_fused_encoder_call.1} parent=31 // pred_check_branch
          %186 = sbr.rel (%p184) target = $region36
        $region35: #{_fused_encoder_call.1} parent=31 // pred_region
          %187 = dma.done %s180, 256
        $region36: #{_fused_encoder_call.1} parent=31 // pred_fallthru
          _
        // Predicated region
        $region37: #{_fused_encoder_call.1} parent=31 // pred_check
          %p188 = pneg %p63
        $region38: #{_fused_encoder_call.1} parent=31 // pred_check_branch
          %190 = sbr.rel (%p188) target = $region40
        $region39: #{_fused_encoder_call.1} parent=31 // pred_region
          %191 = dma.done [#allocation6], 2048
        $region40: #{_fused_encoder_call.1} parent=31 // pred_fallthru
          _
        %s192 = sand.u32 %s29, 1
        %s193 = scalar_lea.sflag [#allocation3], %s192
        %s194 = sand.u32 %s29, 1
        %s195 = smul.addr %s194, 16
        %s196 = scalar_lea.vmem [#allocation2], %s195
        %p197 = pneg %p42
        %p198 = pneg %p39
        %p199 = pneg %p63
        %p200 = pneg %p60
        %p201 = pneg %p84
        %p202 = pneg %p81
        %p203 = pneg %p110
        %p204 = pneg %p107
        %s205 = sand.u32 %s97, 1
        %s206 = scalar_lea.sflag [#allocation4], %s205
        %s207 = sand.u32 %s97, 1
        %s208 = smul.addr %s207, 16
        %s209 = scalar_lea.vmem [#allocation7], %s208
        %s210 = smul.u32 2, %s21
        %s211 = ssub.s32 3, %s210
        %p212 = scmp.lt.s32.totalorder %s211, 2
        %s213 = scalar_select %p212, %s211, 2
        %s214 = smul.u32 128, %s213
        %s215 = smul.u32 2, %s21
        %s216 = ssub.s32 3, %s215
        %p217 = scmp.lt.s32.totalorder %s216, 2
        %s218 = scalar_select %p217, %s216, 2
        %s219 = smul.u32 128, %s218
        %v221 = vld [vmem:[%s183] sm:$0xff]
        %v222 = vld [vmem:[%s183 + $0x8] sm:$0xff]
        %v223 = vpack.c.bf16 %v222, %v221
        %v224 = vld [vmem:[#allocation5] sm:$0xf]
        %v225 = vld [vmem:[#allocation5 + $0x4] sm:$0xf]
        %v226 = vld [vmem:[#allocation5 + $0x8] sm:$0xf]
        %v227 = vld [vmem:[#allocation5 + $0xc] sm:$0xf]
        %v228 = vld [vmem:[#allocation5 + $0x10] sm:$0xf]
        %v229 = vld [vmem:[#allocation5 + $0x14] sm:$0xf]
        %v230 = vld [vmem:[#allocation5 + $0x18] sm:$0xf]
        %v231 = vld [vmem:[#allocation5 + $0x1c] sm:$0xf]
        %v232 = vld [vmem:[#allocation5 + $0x20] sm:$0xf]
        %v233 = vld [vmem:[#allocation5 + $0x24] sm:$0xf]
        %v234 = vld [vmem:[#allocation5 + $0x28] sm:$0xf]
        %v235 = vld [vmem:[#allocation5 + $0x2c] sm:$0xf]
        %v236 = vld [vmem:[#allocation5 + $0x30] sm:$0xf]
        %v237 = vld [vmem:[#allocation5 + $0x34] sm:$0xf]
        %v238 = vld [vmem:[#allocation5 + $0x38] sm:$0xf]
        %v239 = vld [vmem:[#allocation5 + $0x3c] sm:$0xf]
        %v240 = vld [vmem:[%s2] sm:$0x1]
        %v242 = vlaneseq
        %v243 = vshrl.u32 %v242, 7
        %v244 = vsub.s32 0, %v243
        %v245 = vrot.slane %v240, %v244
        %v263 = vunpack.c.l.b16 %v224
        %v264 = vunpack.c.l.b16 %v225
        %v265 = vunpack.c.l.b16 %v226
        %v266 = vunpack.c.l.b16 %v227
        %v267 = vunpack.c.l.b16 %v228
        %v268 = vunpack.c.l.b16 %v229
        %v269 = vunpack.c.l.b16 %v230
        %v270 = vunpack.c.l.b16 %v231
        %v271 = vunpack.c.l.b16 %v232
        %v272 = vunpack.c.l.b16 %v233
        %v273 = vunpack.c.l.b16 %v234
        %v274 = vunpack.c.l.b16 %v235
        %v275 = vunpack.c.l.b16 %v236
        %v276 = vunpack.c.l.b16 %v237
        %v277 = vunpack.c.l.b16 %v238
        %v278 = vunpack.c.l.b16 %v239
        %v279 = vpack.c.b16 %v264, %v263
        %v280 = vpack.c.b16 %v266, %v265
        %v281 = vpack.c.b16 %v268, %v267
        %v282 = vpack.c.b16 %v270, %v269
        %v283 = vpack.c.b16 %v272, %v271
        %v284 = vpack.c.b16 %v274, %v273
        %v285 = vpack.c.b16 %v276, %v275
        %v286 = vpack.c.b16 %v278, %v277
        %295 = vmatprep.subr.bf16.mxu0 0
        %296 = vmatpush1.bf16.msra.mxu0 %v279
        %297 = vmatprep.subr.bf16.mxu0 0
        %298 = vmatpush1.bf16.msra.mxu0 %v280
        %299 = vmatprep.subr.bf16.mxu0 0
        %300 = vmatpush1.bf16.msra.mxu0 %v281
        %301 = vmatprep.subr.bf16.mxu0 0
        %302 = vmatpush1.bf16.msra.mxu0 %v282
        %303 = vmatprep.subr.bf16.mxu0 0
        %304 = vmatpush1.bf16.msra.mxu0 %v283
        %305 = vmatprep.subr.bf16.mxu0 0
        %306 = vmatpush1.bf16.msra.mxu0 %v284
        %307 = vmatprep.subr.bf16.mxu0 0
        %308 = vmatpush1.bf16.msra.mxu0 %v285
        %309 = vmatprep.subr.bf16.mxu0 0
        %310 = vmatpush1.bf16.msra.mxu0 %v286
        %311 = vmatprep.subr.bf16.mxu0 0
        %312 = vmatpush1.bf16.msra.mxu0 0
        %313 = vmatprep.subr.bf16.mxu0 0
        %314 = vmatpush1.bf16.msra.mxu0 0
        %315 = vmatprep.subr.bf16.mxu0 0
        %316 = vmatpush1.bf16.msra.mxu0 0
        %317 = vmatprep.subr.bf16.mxu0 0
        %318 = vmatpush1.bf16.msra.mxu0 0
        %319 = vmatprep.subr.bf16.mxu0 0
        %320 = vmatpush1.bf16.msra.mxu0 0
        %321 = vmatprep.subr.bf16.mxu0 0
        %322 = vmatpush1.bf16.msra.mxu0 0
        %323 = vmatprep.subr.bf16.mxu0 0
        %324 = vmatpush1.bf16.msra.mxu0 0
        %325 = vmatprep.subr.bf16.mxu0 0
        %326 = vmatpush1.bf16.msra.mxu0 0
        %327 = vmatprep.mubr.bf16.mxu0 0
        %328 = vmatmul.mubr.bf16.gmra.mrb[0].mxu0 %v223
        %v329 = vpop.f32.mrb[0].mxu0
        %v330 = vadd.f32 %v245, %v329
        %v331 = vpop.f32.mrb[0].mxu0
        %v332 = vpop.f32.mrb[0].mxu0
        %v333 = vadd.f32 %v245, %v332
        %v334 = vpop.f32.mrb[0].mxu0
        %335 = vdwg.mxu0
        %v336 = vpack.c.bf16 %v333, %v330
        %s337 = scalar_lea.vmem [#allocation5], 64
        %v338 = vld [vmem:[%s337] sm:$0xf]
        %v339 = vld [vmem:[%s337 + $0x4] sm:$0xf]
        %v340 = vld [vmem:[%s337 + $0x8] sm:$0xf]
        %v341 = vld [vmem:[%s337 + $0xc] sm:$0xf]
        %v342 = vld [vmem:[%s337 + $0x10] sm:$0xf]
        %v343 = vld [vmem:[%s337 + $0x14] sm:$0xf]
        %v344 = vld [vmem:[%s337 + $0x18] sm:$0xf]
        %v345 = vld [vmem:[%s337 + $0x1c] sm:$0xf]
        %v346 = vld [vmem:[%s337 + $0x20] sm:$0xf]
        %v347 = vld [vmem:[%s337 + $0x24] sm:$0xf]
        %v348 = vld [vmem:[%s337 + $0x28] sm:$0xf]
        %v349 = vld [vmem:[%s337 + $0x2c] sm:$0xf]
        %v350 = vld [vmem:[%s337 + $0x30] sm:$0xf]
        %v351 = vld [vmem:[%s337 + $0x34] sm:$0xf]
        %v352 = vld [vmem:[%s337 + $0x38] sm:$0xf]
        %v353 = vld [vmem:[%s337 + $0x3c] sm:$0xf]
        %s354 = scalar_lea.vmem %s2, 1
        %v355 = vld [vmem:[%s354] sm:$0x1]
        %v357 = vlaneseq
        %v358 = vshrl.u32 %v357, 7
        %v359 = vsub.s32 0, %v358
        %v360 = vrot.slane %v355, %v359
        %v378 = vunpack.c.l.b16 %v338
        %v379 = vunpack.c.l.b16 %v339
        %v380 = vunpack.c.l.b16 %v340
        %v381 = vunpack.c.l.b16 %v341
        %v382 = vunpack.c.l.b16 %v342
        %v383 = vunpack.c.l.b16 %v343
        %v384 = vunpack.c.l.b16 %v344
        %v385 = vunpack.c.l.b16 %v345
        %v386 = vunpack.c.l.b16 %v346
        %v387 = vunpack.c.l.b16 %v347
        %v388 = vunpack.c.l.b16 %v348
        %v389 = vunpack.c.l.b16 %v349
        %v390 = vunpack.c.l.b16 %v350
        %v391 = vunpack.c.l.b16 %v351
        %v392 = vunpack.c.l.b16 %v352
        %v393 = vunpack.c.l.b16 %v353
        %v394 = vpack.c.b16 %v379, %v378
        %v395 = vpack.c.b16 %v381, %v380
        %v396 = vpack.c.b16 %v383, %v382
        %v397 = vpack.c.b16 %v385, %v384
        %v398 = vpack.c.b16 %v387, %v386
        %v399 = vpack.c.b16 %v389, %v388
        %v400 = vpack.c.b16 %v391, %v390
        %v401 = vpack.c.b16 %v393, %v392
        %410 = vmatprep.subr.bf16.mxu0 0
        %411 = vmatpush1.bf16.msra.mxu0 %v394
        %412 = vmatprep.subr.bf16.mxu0 0
        %413 = vmatpush1.bf16.msra.mxu0 %v395
        %414 = vmatprep.subr.bf16.mxu0 0
        %415 = vmatpush1.bf16.msra.mxu0 %v396
        %416 = vmatprep.subr.bf16.mxu0 0
        %417 = vmatpush1.bf16.msra.mxu0 %v397
        %418 = vmatprep.subr.bf16.mxu0 0
        %419 = vmatpush1.bf16.msra.mxu0 %v398
        %420 = vmatprep.subr.bf16.mxu0 0
        %421 = vmatpush1.bf16.msra.mxu0 %v399
        %422 = vmatprep.subr.bf16.mxu0 0
        %423 = vmatpush1.bf16.msra.mxu0 %v400
        %424 = vmatprep.subr.bf16.mxu0 0
        %425 = vmatpush1.bf16.msra.mxu0 %v401
        %426 = vmatprep.subr.bf16.mxu0 0
        %427 = vmatpush1.bf16.msra.mxu0 0
        %428 = vmatprep.subr.bf16.mxu0 0
        %429 = vmatpush1.bf16.msra.mxu0 0
        %430 = vmatprep.subr.bf16.mxu0 0
        %431 = vmatpush1.bf16.msra.mxu0 0
        %432 = vmatprep.subr.bf16.mxu0 0
        %433 = vmatpush1.bf16.msra.mxu0 0
        %434 = vmatprep.subr.bf16.mxu0 0
        %435 = vmatpush1.bf16.msra.mxu0 0
        %436 = vmatprep.subr.bf16.mxu0 0
        %437 = vmatpush1.bf16.msra.mxu0 0
        %438 = vmatprep.subr.bf16.mxu0 0
        %439 = vmatpush1.bf16.msra.mxu0 0
        %440 = vmatprep.subr.bf16.mxu0 0
        %441 = vmatpush1.bf16.msra.mxu0 0
        %442 = vmatprep.mubr.bf16.mxu0 0
        %443 = vmatmul.mubr.bf16.gmra.mrb[0].mxu0 %v336
        %v444 = vpop.f32.mrb[0].mxu0
        %v445 = vadd.f32 %v360, %v444
        %v446 = vpop.f32.mrb[0].mxu0
        %v447 = vpop.f32.mrb[0].mxu0
        %v448 = vadd.f32 %v360, %v447
        %v449 = vpop.f32.mrb[0].mxu0
        %450 = vdwg.mxu0
        %451 = vst [vmem:[%s209] sm:$0xff] %v445
        %452 = vst [vmem:[%s209 + $0x8] sm:$0xff] %v448
        %s453 = sand.u32 %s97, 1
        %s454 = scalar_lea.sflag [#allocation4], %s453
        %s455 = sand.u32 %s97, 1
        %s456 = smul.addr %s455, 16
        %s457 = scalar_lea.vmem [#allocation7], %s456
        // Predicated region
        $region41: #{_fused_encoder_call.1} parent=31 // pred_check
          %p458 = pneg %p107
        $region42: #{_fused_encoder_call.1} parent=31 // pred_check_branch
          %460 = sbr.rel (%p458) target = $region44
        $region43: #{_fused_encoder_call.1} parent=31 // pred_region
          %s461 = smul.u32 2, %s21
          %s462 = ssub.s32 3, %s461
          %p463 = scmp.lt.s32.totalorder %s462, 2
          %s464 = scalar_select %p463, %s462, 2
          %s465 = smul.u32 128, %s464
          %s467 = ssub.s32 256, %s465
          %468 = vsyncadd %s454, %s467
          %p469 = scmp.ne.s32.totalorder 0, %s465
          %s470 = smul.addr %s461, 128
          %s471 = scalar_lea.hbm %s3, %s470
          %s472 = smul.u32 8, %s464
          %s473 = sshll.u32 %s457, 4
          %s474 = int_to_ptr.vmem [resolvable:$true] %s473
          %s475 = sshll.u32 %s472, 4
          %479 = dma.vmem_to_hbm [thread:$0]  (%p469), %s474, %s475, %s471, %s454, 128, 128, 8
        $region44: #{_fused_encoder_call.1} parent=31 // pred_fallthru
          _
      $region32: #{_fused_encoder_call.1} parent=5 // pred_fallthru
        _
      %p480 = scmp.le.s32.totalorder 2, %s16
      // Predicated region
      $region45: #{_fused_encoder_call.1} parent=5 // pred_check
        %p481 = pneg %p480
      $region46: #{_fused_encoder_call.1} parent=5 // pred_check_branch
        %483 = sbr.rel (%p481) target = $region48
      $region47: #{_fused_encoder_call.1} parent=5 // pred_region
        %s484 = ssub.s32 %s16, 2
        // Predicated region
        $region49: #{_fused_encoder_call.1} parent=47 // pred_check
          %p485 = pneg %p113
        $region50: #{_fused_encoder_call.1} parent=47 // pred_check_branch
          %487 = sbr.rel (%p485) target = $region52
        $region51: #{_fused_encoder_call.1} parent=47 // pred_region
          %s488 = sand.u32 %s98, 1
          %s489 = scalar_lea.sflag [#allocation4], %s488
          %s490 = sand.u32 %s98, 1
          %s491 = smul.addr %s490, 16
          %s492 = scalar_lea.vmem [#allocation7], %s491
          %493 = dma.done %s489, 256
        $region52: #{_fused_encoder_call.1} parent=47 // pred_fallthru
          _
      $region48: #{_fused_encoder_call.1} parent=5 // pred_fallthru
        _
    $region6: #{_fused_encoder_call.1} parent=1 // loop_footer
      %s20 = sadd.s32 1, %s16
    $region7: #{_fused_encoder_call.1} parent=1 // loop_footer_branch
      %15 = sbr.rel target = $region3
    $region8: #{_fused_encoder_call.1} parent=1 // loop_exit
      _
    %494 = vsyncpa [#allocation3], 1
    %s495 = scalar_lea.sflag [#allocation3], 1
    %496 = vsyncpa %s495, 1
    %497 = vsyncpa [#allocation6], 1
    %498 = vsyncpa [#allocation4], 1
    %s499 = scalar_lea.sflag [#allocation4], 1
    %500 = vsyncpa %s499, 1

</llo_original>
